<compile_context>
chip_gen: v6e
topology: v6e:2x2x1
jax: 0.10.0
libtpu: 0.0.40
codegen_flags: <defaults>
</compile_context>

<pallas_src>
import math

import numpy as np
import jax
import jax.numpy as jnp
from jax.experimental import pallas as pl
from jax.experimental.pallas import tpu as pltpu


# ------------------------------ block sizing ---------------------------------

def _pick_block(n_imgs: int, per_img_bytes: int, ho: int):
    """Return (images per grid step, padded image count).

    tb must be a multiple of 8 (sublane alignment of the (tb,K) weight block)
    or equal to the image count, and must divide the (possibly padded) image
    count so the input never needs a full-array pad.  Target ~2 MiB of input
    per step, capped so the in-kernel per-output-row weight expansion
    ((tb*Ho) x 128-lane f32) stays modest.
    """
    target = max(8, (2 * 1024 * 1024) // max(1, per_img_bytes))
    target = min(target, max(8, 4096 // max(1, ho)))

    if n_imgs <= target:
        # Split into two steps when cheap so 2-TensorCore chips share the work.
        if n_imgs % 16 == 0 and n_imgs >= 16:
            return n_imgs // 2, n_imgs
        return n_imgs, n_imgs

    cands = [d for d in range(8, n_imgs + 1, 8) if n_imgs % d == 0]
    if cands:
        good = [d for d in cands if d <= target]
        if not good:
            return min(cands), n_imgs
        best = max(good)
        # Mild preference for an even number of grid steps (megacore), without
        # giving up more than 2x block size.
        even = [d for d in good if (n_imgs // d) % 2 == 0 and 2 * d >= best]
        return (max(even) if even else best), n_imgs

    # Rare fallback: N has no multiple-of-8 divisor -> pad the image count
    # (costs one extra input copy; never hit for typical B*C).
    np_imgs = -(-n_imgs // 8) * 8
    cands = [d for d in range(8, np_imgs + 1, 8) if np_imgs % d == 0]
    good = [d for d in cands if d <= target] or [min(cands)]
    return max(good), np_imgs


# ------------------------------ Pallas kernels --------------------------------
#
# Row indexing (original coordinates, pad = 1 on top/bottom):
#   output row `oh` uses input rows (2*oh - 1, 2*oh, 2*oh + 1), zeros outside.


def _row_taps(x, Ho):
    """r0/r1/r2 planes (tb, Ho, W): input rows 2*oh-1 / 2*oh / 2*oh+1 (zero-padded)."""
    tb, H, W = x.shape
    n_odd = H // 2
    if n_odd == 0:                                   # H == 1
        z = jnp.zeros((tb, Ho, W), jnp.float32)
        return z, x, z

    xp = x[:, : 2 * n_odd, :].reshape(tb, n_odd, 2, W)
    x_ev = xp[:, :, 0, :]                            # rows 0, 2, ...
    x_od = xp[:, :, 1, :]                            # rows 1, 3, ...
    if H % 2 == 1:                                   # last row has an even index
        x_ev = jnp.concatenate([x_ev, x[:, H - 1:, :]], axis=1)

    zrow = jnp.zeros((tb, 1, W), jnp.float32)
    r1 = x_ev                                                           # 2*oh
    if Ho == 1:
        r0 = zrow                                                       # 2*oh-1
    else:
        r0 = jnp.concatenate([zrow, x_od[:, : Ho - 1, :]], axis=1)
    r2 = x_od if n_odd == Ho else jnp.concatenate([x_od, zrow], axis=1)  # 2*oh+1
    return r0, r1, r2


def _dw_conv_h_kernel(w_ref, b_ref, x_ref, o_ref):
    """Depthwise conv, kernel (3,1), stride (2,1), pad (1,0).

    w_ref: (tb, 3) f32 per-image taps   b_ref: (tb, 1) f32
    x_ref: (tb, H, W)                   o_ref: (tb*Ho, W)
    """
    tb, H, W = x_ref.shape
    rows = o_ref.shape[0]
    Ho = rows // tb

    x = x_ref[...].astype(jnp.float32)
    r0, r1, r2 = _row_taps(x, Ho)
    r0 = r0.reshape(rows, W)
    r1 = r1.reshape(rows, W)
    r2 = r2.reshape(rows, W)

    # Per-output-row taps / bias: (tb, .) -> (tb*Ho, .) sublane broadcast.
    wr = jnp.broadcast_to(w_ref[...][:, None, :], (tb, Ho, 3)).reshape(rows, 3)
    br = jnp.broadcast_to(b_ref[...][:, None, :], (tb, Ho, 1)).reshape(rows, 1)

    out = wr[:, 0:1] * r0 + wr[:, 1:2] * r1 + wr[:, 2:3] * r2 + br
    o_ref[...] = out.astype(o_ref.dtype)


def _dw_conv_hw_kernel(w_ref, b_ref, sel_ref, x_ref, o_ref):
    """Depthwise conv, kernel (3,3), stride (2,2), pad (1,1).

    w_ref:   (tb, 9) f32 per-image taps (index ki*3 + kj)
    b_ref:   (tb, 1) f32
    sel_ref: (3, W, Wo) f32 0/1 stride-2 column selectors (grid-resident)
    x_ref:   (tb, H, W)
    o_ref:   (tb*Ho, Wo)
    """
    tb, H, W = x_ref.shape
    rows, Wo = o_ref.shape
    Ho = rows // tb

    x = x_ref[...].astype(jnp.float32)
    r0, r1, r2 = _row_taps(x, Ho)
    r0 = r0.reshape(rows, W)
    r1 = r1.reshape(rows, W)
    r2 = r2.reshape(rows, W)

    wr = jnp.broadcast_to(w_ref[...][:, None, :], (tb, Ho, 9)).reshape(rows, 9)
    br = jnp.broadcast_to(b_ref[...][:, None, :], (tb, Ho, 1)).reshape(rows, 1)

    # out[., ow] = z0[., 2ow-1] + z1[., 2ow] + z2[., 2ow+1]  (zeros outside).
    # Compute each z plane and immediately feed the MXU: one z live at a time.
    acc = None
    for kj in range(3):
        z = (wr[:, kj:kj + 1] * r0
             + wr[:, 3 + kj:4 + kj] * r1
             + wr[:, 6 + kj:7 + kj] * r2)
        part = jnp.dot(z, sel_ref[kj], preferred_element_type=jnp.float32)
        acc = part if acc is None else acc + part

    o_ref[...] = (acc + br).astype(o_ref.dtype)


# --------------------------------- module -------------------------------------

class LearnedDownSample:
    """Pallas port of the PyTorch LearnedDownSample module (forward pass)."""

    def __init__(self, layer_type: str, dim_in: int, *, key=None):
        if layer_type not in ("none", "timepreserve", "half"):
            raise RuntimeError(
                "Got unexpected donwsampletype %s, expected is [none, timepreserve, half]"
                % layer_type)
        self.layer_type = layer_type
        self.dim_in = dim_in
        self._param_cache = {}
        self._sel_cache = {}
        if layer_type == "none":
            return

        kh, kw = (3, 1) if layer_type == "timepreserve" else (3, 3)
        if key is None:
            key = jax.random.PRNGKey(0)
        k_w, k_b = jax.random.split(key)

        fan_in = kh * kw                        # in_ch / groups * kh * kw
        bound = 1.0 / math.sqrt(fan_in)         # PyTorch Conv2d default init
        w = jax.random.uniform(k_w, (dim_in, 1, kh, kw), jnp.float32, -bound, bound)
        b = jax.random.uniform(k_b, (dim_in,), jnp.float32, -bound, bound)

        # Spectral normalization of the (C, kh*kw) weight matrix.
        # TODO(synk): torch's spectral_norm does one power iteration per forward
        # with persistent u/v buffers; sigma here is the exact SVD at init.
        w_mat = np.asarray(w).reshape(dim_in, -1)
        sigma = float(np.linalg.svd(w_mat, compute_uv=False)[0])
        w_sn = w / sigma

        self.kh, self.kw = kh, kw
        self.weight = jnp.asarray(w_sn)                               # (C,1,kh,kw)
        self.w_taps = jnp.asarray(w_sn.reshape(dim_in, kh * kw))      # (C, kh*kw)
        self.bias = jnp.asarray(b)                                    # (C,)

    # per-image (N,K)/(N,1) tap arrays (tiny; cached per batch size)
    def _per_image_params(self, B):
        cached = self._param_cache.get(B)
        if cached is None:
            C, K = self.w_taps.shape
            w_img = jnp.broadcast_to(self.w_taps[None], (B, C, K)).reshape(B * C, K)
            b_img = jnp.broadcast_to(self.bias[None, :, None], (B, C, 1)).reshape(B * C, 1)
            cached = (w_img, b_img)
            self._param_cache[B] = cached
        return cached

    # stride-2 column selectors, built once per (W, Wo) and kept VMEM-resident
    def _selector(self, W, Wo):
        key = (W, Wo)
        s = self._sel_cache.get(key)
        if s is None:
            p = np.arange(W)[:, None]
            q = np.arange(Wo)[None, :]
            s = np.stack([(p == (2 * q - 1 + kj)) for kj in range(3)],
                         axis=0).astype(np.float32)                   # (3, W, Wo)
            s = jnp.asarray(s)
            self._sel_cache[key] = s
        return s

    def __call__(self, x: jnp.ndarray) -> jnp.ndarray:
        if self.layer_type == "none":
            return x

        B, C, H, W = x.shape
        assert C == self.dim_in
        N = B * C
        K = self.w_taps.shape[1]
        Ho = (H - 1) // 2 + 1
        Wo = W if self.layer_type == "timepreserve" else (W - 1) // 2 + 1

        tb, Np = _pick_block(N, H * W * x.dtype.itemsize, Ho)
        n_blocks = Np // tb
        rows_blk = tb * Ho

        x_flat = x.reshape(N, H, W)
        w_img, b_img = self._per_image_params(B)
        if Np != N:
            pad = Np - N   # rare fallback; see _pick_block
            x_flat = jnp.pad(x_flat, ((0, pad), (0, 0), (0, 0)))
            w_img = jnp.pad(w_img, ((0, pad), (0, 0)))
            b_img = jnp.pad(b_img, ((0, pad), (0, 0)))

        if self.layer_type == "timepreserve":
            kern = _dw_conv_h_kernel
            in_specs = [
                pl.BlockSpec((tb, K), lambda i: (i, 0)),
                pl.BlockSpec((tb, 1), lambda i: (i, 0)),
                pl.BlockSpec((tb, H, W), lambda i: (i, 0, 0)),
            ]
            args = (w_img, b_img, x_flat)
        else:
            kern = _dw_conv_hw_kernel
            sel = self._selector(W, Wo)
            in_specs = [
                pl.BlockSpec((tb, K), lambda i: (i, 0)),
                pl.BlockSpec((tb, 1), lambda i: (i, 0)),
                pl.BlockSpec((3, W, Wo), lambda i: (0, 0, 0)),   # resident
                pl.BlockSpec((tb, H, W), lambda i: (i, 0, 0)),
            ]
            args = (w_img, b_img, sel, x_flat)

        out_rows = pl.pallas_call(
            kern,
            out_shape=jax.ShapeDtypeStruct((Np * Ho, Wo), x.dtype),
            grid_spec=pltpu.PrefetchScalarGridSpec(
                num_scalar_prefetch=0,
                grid=(n_blocks,),
                in_specs=in_specs,
                out_specs=pl.BlockSpec((rows_blk, Wo), lambda i: (i, 0)),
            ),
            compiler_params=pltpu.CompilerParams(
                dimension_semantics=("parallel",),
                vmem_limit_bytes=32 * 1024 * 1024,
            ),
        )(*args)

        if Np != N:
            out_rows = out_rows[: N * Ho]
        return out_rows.reshape(B, C, Ho, Wo)


# ----------------------------- plain-JAX reference -----------------------------

def _ref_forward(module: LearnedDownSample, x: jnp.ndarray) -> jnp.ndarray:
    if module.layer_type == "none":
        return x
    if module.layer_type == "timepreserve":
        stride, pad = (2, 1), ((1, 1), (0, 0))
    else:
        stride, pad = (2, 2), ((1, 1), (1, 1))
    out = jax.lax.conv_general_dilated(
        x.astype(jnp.float32), module.weight,
        window_strides=stride, padding=pad,
        dimension_numbers=("NCHW", "OIHW", "NCHW"),
        feature_group_count=x.shape[1])
    return (out + module.bias[None, :, None, None]).astype(x.dtype)


# ------------------------------------ main --------------------------------------

if __name__ == "__main__":
    root = jax.random.PRNGKey(0)
    kx1, kx2, km1, km2, km3, km4 = jax.random.split(root, 6)

    x = jax.random.normal(kx1, (2, 4, 16, 16), dtype=jnp.float32)
    x_odd = jax.random.normal(kx2, (2, 4, 7, 9), dtype=jnp.float32)

    # 'none' -> identity
    m_none = LearnedDownSample("none", 4)
    y = m_none(x)
    jax.block_until_ready(y)
    np.testing.assert_allclose(np.asarray(y), np.asarray(x))

    # 'timepreserve' (even and odd H)
    m_tp = LearnedDownSample("timepreserve", 4, key=km1)
    y = m_tp(x)
    jax.block_until_ready(y)
    np.testing.assert_allclose(np.asarray(y), np.asarray(_ref_forward(m_tp, x)),
                               rtol=1e-5, atol=1e-5)

    m_tp2 = LearnedDownSample("timepreserve", 4, key=km2)
    y = m_tp2(x_odd)
    jax.block_until_ready(y)
    np.testing.assert_allclose(np.asarray(y), np.asarray(_ref_forward(m_tp2, x_odd)),
                               rtol=1e-5, atol=1e-5)

    # 'half' (even and odd H/W)
    m_h = LearnedDownSample("half", 4, key=km3)
    y = m_h(x)
    jax.block_until_ready(y)
    np.testing.assert_allclose(np.asarray(y), np.asarray(_ref_forward(m_h, x)),
                               rtol=1e-5, atol=1e-5)

    m_h2 = LearnedDownSample("half", 4, key=km4)
    y = m_h2(x_odd)
    jax.block_until_ready(y)
    np.testing.assert_allclose(np.asarray(y), np.asarray(_ref_forward(m_h2, x_odd)),
                               rtol=1e-5, atol=1e-5)

    print("KERNEL_OK")
</pallas_src>

<mosaic_0001>
module attributes {stable_mosaic.version = 11 : i64} {
  func.func @_dw_conv_h_kernel(%arg0: i32, %arg1: memref<8x3xf32, #tpu.memory_space<vmem>>, %arg2: memref<8x1xf32, #tpu.memory_space<vmem>>, %arg3: memref<8x16x16xf32, #tpu.memory_space<vmem>>, %arg4: memref<64x16xf32, #tpu.memory_space<vmem>>) attributes {dimension_semantics = [#tpu.dimension_semantics<parallel>], iteration_bounds = array<i64: 1>, scalar_prefetch = 0 : i64, scratch_operands = 0 : i64, tpu.core_type = #tpu.core_type<tc>, window_params = [{transform_indices = @transform_0, window_bounds = array<i64: 8, 3>}, {transform_indices = @transform_1, window_bounds = array<i64: 8, 1>}, {transform_indices = @transform_2, window_bounds = array<i64: 8, 16, 16>}, {transform_indices = @transform_3, window_bounds = array<i64: 64, 16>}]} {
    %c0 = arith.constant 0 : index
    %c0_0 = arith.constant 0 : index
    %c0_1 = arith.constant 0 : index
    %0 = vector.load %arg3[%c0, %c0_0, %c0_1] : memref<8x16x16xf32, #tpu.memory_space<vmem>>, vector<8x16x16xf32>
    %1 = vector.shape_cast %0 : vector<8x16x16xf32> to vector<8x8x2x16xf32>
    %2 = vector.extract_strided_slice %1 {offsets = [0, 0, 0, 0], sizes = [8, 8, 1, 16], strides = [1, 1, 1, 1]} : vector<8x8x2x16xf32> to vector<8x8x1x16xf32>
    %3 = vector.shape_cast %2 : vector<8x8x1x16xf32> to vector<8x8x16xf32>
    %4 = vector.extract_strided_slice %1 {offsets = [0, 0, 1, 0], sizes = [8, 8, 1, 16], strides = [1, 1, 1, 1]} : vector<8x8x2x16xf32> to vector<8x8x1x16xf32>
    %5 = vector.shape_cast %4 : vector<8x8x1x16xf32> to vector<8x8x16xf32>
    %cst = arith.constant 0.000000e+00 : f32
    %6 = vector.broadcast %cst : f32 to vector<8x1x16xf32>
    %7 = vector.extract_strided_slice %5 {offsets = [0, 0, 0], sizes = [8, 7, 16], strides = [1, 1, 1]} : vector<8x8x16xf32> to vector<8x7x16xf32>
    %8 = tpu.concatenate %6, %7 in 1 : vector<8x1x16xf32>, vector<8x7x16xf32> -> vector<8x8x16xf32>
    %9 = vector.shape_cast %8 : vector<8x8x16xf32> to vector<64x16xf32>
    %10 = vector.shape_cast %3 : vector<8x8x16xf32> to vector<64x16xf32>
    %11 = vector.shape_cast %5 : vector<8x8x16xf32> to vector<64x16xf32>
    %c0_2 = arith.constant 0 : index
    %c0_3 = arith.constant 0 : index
    %12 = vector.load %arg1[%c0_2, %c0_3] : memref<8x3xf32, #tpu.memory_space<vmem>>, vector<8x3xf32>
    %13 = vector.shape_cast %12 : vector<8x3xf32> to vector<8x1x3xf32>
    %14 = vector.shape_cast %13 : vector<8x1x3xf32> to vector<8x1x3xf32>
    %15 = vector.broadcast %14 : vector<8x1x3xf32> to vector<8x8x3xf32>
    %16 = vector.shape_cast %15 : vector<8x8x3xf32> to vector<64x3xf32>
    %c0_4 = arith.constant 0 : index
    %c0_5 = arith.constant 0 : index
    %17 = vector.load %arg2[%c0_4, %c0_5] : memref<8x1xf32, #tpu.memory_space<vmem>>, vector<8x1xf32>
    %18 = vector.shape_cast %17 : vector<8x1xf32> to vector<8x1x1xf32>
    %19 = vector.shape_cast %18 : vector<8x1x1xf32> to vector<8x1x1xf32>
    %20 = vector.broadcast %19 : vector<8x1x1xf32> to vector<8x8x1xf32>
    %21 = vector.shape_cast %20 : vector<8x8x1xf32> to vector<64x1xf32>
    %22 = vector.extract_strided_slice %16 {offsets = [0, 0], sizes = [64, 1], strides = [1, 1]} : vector<64x3xf32> to vector<64x1xf32>
    %23 = vector.broadcast %22 : vector<64x1xf32> to vector<64x16xf32>
    %24 = arith.mulf %23, %9 : vector<64x16xf32>
    %25 = vector.extract_strided_slice %16 {offsets = [0, 1], sizes = [64, 1], strides = [1, 1]} : vector<64x3xf32> to vector<64x1xf32>
    %26 = vector.broadcast %25 : vector<64x1xf32> to vector<64x16xf32>
    %27 = arith.mulf %26, %10 : vector<64x16xf32>
    %28 = arith.addf %24, %27 : vector<64x16xf32>
    %29 = vector.extract_strided_slice %16 {offsets = [0, 2], sizes = [64, 1], strides = [1, 1]} : vector<64x3xf32> to vector<64x1xf32>
    %30 = vector.broadcast %29 : vector<64x1xf32> to vector<64x16xf32>
    %31 = arith.mulf %30, %11 : vector<64x16xf32>
    %32 = arith.addf %28, %31 : vector<64x16xf32>
    %33 = vector.broadcast %21 : vector<64x1xf32> to vector<64x16xf32>
    %34 = arith.addf %32, %33 : vector<64x16xf32>
    %c0_6 = arith.constant 0 : index
    %c0_7 = arith.constant 0 : index
    %35 = vector.load %arg4[%c0_6, %c0_7] : memref<64x16xf32, #tpu.memory_space<vmem>>, vector<64x16xf32>
    tpu.vector_store %arg4[%c0_6, %c0_7], %34 {strides = array<i32>} : memref<64x16xf32, #tpu.memory_space<vmem>>, vector<64x16xf32>,
    return
  }
  func.func @transform_0(%arg0: i32) -> (i32, i32) {
    %c0_i32 = arith.constant 0 : i32
    %c0_i32_0 = arith.constant 0 : i32
    return %arg0, %c0_i32 : i32, i32
  }
  func.func @transform_1(%arg0: i32) -> (i32, i32) {
    %c0_i32 = arith.constant 0 : i32
    %c0_i32_0 = arith.constant 0 : i32
    return %arg0, %c0_i32 : i32, i32
  }
  func.func @transform_2(%arg0: i32) -> (i32, i32, i32) {
    %c0_i32 = arith.constant 0 : i32
    %c0_i32_0 = arith.constant 0 : i32
    %c0_i32_1 = arith.constant 0 : i32
    return %arg0, %c0_i32, %c0_i32_0 : i32, i32, i32
  }
  func.func @transform_3(%arg0: i32) -> (i32, i32) {
    %c0_i32 = arith.constant 0 : i32
    %c0_i32_0 = arith.constant 0 : i32
    return %arg0, %c0_i32 : i32, i32
  }
}

</mosaic_0001>

<llo_original>
// kernel: tpu_custom_call.1
$region0: #{tpu_custom_call.1}
  #allocation0 [shape = 'u32[]', space=smem, size = 0x4, offset = 0x4, fixed_abs, tag = 'smem constant byte address 0x4 - core index']
  #allocation1 [shape = 'u32[144,128]{1,0:T(1,128)}', space=vmem, size = 0x12000, scoped, tag = 'internal scratch']
  %s0 = inlined_call_operand.vmem [shape: f32[8,3], index: 0, kind: input, shape index: {}]
  %s1 = inlined_call_operand.vmem [shape: f32[8,1], index: 1, kind: input, shape index: {}]
  %s2 = inlined_call_operand.hbm [shape: f32[8,16,16], index: 2, kind: input, shape index: {}]
  %s3 = inlined_call_operand.vmem [shape: f32[64,16], index: 3, kind: output, shape index: {}]
  %s4 = sld [smem:[#allocation0]]
  $region26: #{tpu_custom_call.1} parent=0
    _
  %s6 = ssub.s32 1, %s4
  %s7 = scalar_select 0, %s6, %s4
  $region1: #{tpu_custom_call.1} parent=0
    #allocation2 [shape = 'u8[65536]{0}', space=vmem, size = 0x10000, scoped, tag = 'input window, operand 2, single buffered']
    #allocation3 [shape = 's32[1]{0}', space=sflag, size = 0x4, scoped, tag = 'scoped memory for tpu_custom_call.1']
    %8 = vsyncpa [#allocation3], 0
    // Predicated region
    $region2: #{tpu_custom_call.1} parent=1 // pred_check
      _
    $region3: #{tpu_custom_call.1} parent=1 // pred_check_branch
      %10 = sbr.rel (0) target = $region5
    $region4: #{tpu_custom_call.1} parent=1 // pred_region
      _
    $region5: #{tpu_custom_call.1} parent=1 // pred_fallthru
      _
    // Predicated region
    $region6: #{tpu_custom_call.1} parent=1 // pred_check
      _
    $region7: #{tpu_custom_call.1} parent=1 // pred_check_branch
      %12 = sbr.rel (0) target = $region9
    $region8: #{tpu_custom_call.1} parent=1 // pred_region
      _
    $region9: #{tpu_custom_call.1} parent=1 // pred_fallthru
      _
    // Predicated region
    $region10: #{tpu_custom_call.1} parent=1 // pred_check
      _
    $region11: #{tpu_custom_call.1} parent=1 // pred_check_branch
      %14 = sbr.rel (0) target = $region13
    $region12: #{tpu_custom_call.1} parent=1 // pred_region
      %s16 = ssub.s32 2048, 2048
      %17 = vsyncadd [#allocation3], %s16
      %s18 = sshll.u32 [#allocation2], 4
      %s19 = int_to_ptr.vmem [resolvable:$true] %s18
      %24 = dma.hbm_to_vmem [thread:$0]  %s2, 2048, %s19, [#allocation3], 128, 128, 8
    $region13: #{tpu_custom_call.1} parent=1 // pred_fallthru
      _
    // Predicated region
    $region14: #{tpu_custom_call.1} parent=1 // pred_check
      _
    $region15: #{tpu_custom_call.1} parent=1 // pred_check_branch
      %26 = sbr.rel (0) target = $region17
    $region16: #{tpu_custom_call.1} parent=1 // pred_region
      %27 = dma.done [#allocation3], 2048
    $region17: #{tpu_custom_call.1} parent=1 // pred_fallthru
      _
    %v28 = vld [vmem:[#allocation2] sm:$0xff]
    %v29 = vld [vmem:[#allocation2 + $0x8] sm:$0xff]
    %v30 = vld [vmem:[#allocation2 + $0x10] sm:$0xff]
    %v31 = vld [vmem:[#allocation2 + $0x18] sm:$0xff]
    %v32 = vld [vmem:[#allocation2 + $0x20] sm:$0xff]
    %v33 = vld [vmem:[#allocation2 + $0x28] sm:$0xff]
    %v34 = vld [vmem:[#allocation2 + $0x30] sm:$0xff]
    %v35 = vld [vmem:[#allocation2 + $0x38] sm:$0xff]
    %v36 = vld [vmem:[#allocation2 + $0x40] sm:$0xff]
    %v37 = vld [vmem:[#allocation2 + $0x48] sm:$0xff]
    %v38 = vld [vmem:[#allocation2 + $0x50] sm:$0xff]
    %v39 = vld [vmem:[#allocation2 + $0x58] sm:$0xff]
    %v40 = vld [vmem:[#allocation2 + $0x60] sm:$0xff]
    %v41 = vld [vmem:[#allocation2 + $0x68] sm:$0xff]
    %v42 = vld [vmem:[#allocation2 + $0x70] sm:$0xff]
    %v43 = vld [vmem:[#allocation2 + $0x78] sm:$0xff]
    %v60 = vcombine.high %v28, %v28
    %v62 = vunpack.c.l.s4 1983009808
    %v63 = vunpack.c.0.s8 %v62
    %v64 = vlaneseq
    %v65 = vshrl.u32 %v64, 7
    %v66 = vsub.s32 %v63, %v65
    %v67 = vrot.slane %v28, %v66
    %v69 = vunpack.c.l.s4 1983009808
    %v70 = vunpack.c.0.s8 %v69
    %v71 = vlaneseq
    %v72 = vshrl.u32 %v71, 7
    %v73 = vsub.s32 %v70, %v72
    %v74 = vrot.slane %v60, %v73
    %v75 = vcombine.high %v67, %v67
    %v76 = vcombine.high %v74, %v74
    %v77 = vcombine.high %v29, %v29
    %v79 = vunpack.c.l.s4 1983009808
    %v80 = vunpack.c.0.s8 %v79
    %v81 = vlaneseq
    %v82 = vshrl.u32 %v81, 7
    %v83 = vsub.s32 %v80, %v82
    %v84 = vrot.slane %v29, %v83
    %v86 = vunpack.c.l.s4 1983009808
    %v87 = vunpack.c.0.s8 %v86
    %v88 = vlaneseq
    %v89 = vshrl.u32 %v88, 7
    %v90 = vsub.s32 %v87, %v89
    %v91 = vrot.slane %v77, %v90
    %v92 = vcombine.high %v84, %v84
    %v93 = vcombine.high %v91, %v91
    %v94 = vcombine.high %v30, %v30
    %v96 = vunpack.c.l.s4 1983009808
    %v97 = vunpack.c.0.s8 %v96
    %v98 = vlaneseq
    %v99 = vshrl.u32 %v98, 7
    %v100 = vsub.s32 %v97, %v99
    %v101 = vrot.slane %v30, %v100
    %v103 = vunpack.c.l.s4 1983009808
    %v104 = vunpack.c.0.s8 %v103
    %v105 = vlaneseq
    %v106 = vshrl.u32 %v105, 7
    %v107 = vsub.s32 %v104, %v106
    %v108 = vrot.slane %v94, %v107
    %v109 = vcombine.high %v101, %v101
    %v110 = vcombine.high %v108, %v108
    %v111 = vcombine.high %v31, %v31
    %v113 = vunpack.c.l.s4 1983009808
    %v114 = vunpack.c.0.s8 %v113
    %v115 = vlaneseq
    %v116 = vshrl.u32 %v115, 7
    %v117 = vsub.s32 %v114, %v116
    %v118 = vrot.slane %v31, %v117
    %v120 = vunpack.c.l.s4 1983009808
    %v121 = vunpack.c.0.s8 %v120
    %v122 = vlaneseq
    %v123 = vshrl.u32 %v122, 7
    %v124 = vsub.s32 %v121, %v123
    %v125 = vrot.slane %v111, %v124
    %v126 = vcombine.high %v118, %v118
    %v127 = vcombine.high %v125, %v125
    %v128 = vcombine.high %v32, %v32
    %v130 = vunpack.c.l.s4 1983009808
    %v131 = vunpack.c.0.s8 %v130
    %v132 = vlaneseq
    %v133 = vshrl.u32 %v132, 7
    %v134 = vsub.s32 %v131, %v133
    %v135 = vrot.slane %v32, %v134
    %v137 = vunpack.c.l.s4 1983009808
    %v138 = vunpack.c.0.s8 %v137
    %v139 = vlaneseq
    %v140 = vshrl.u32 %v139, 7
    %v141 = vsub.s32 %v138, %v140
    %v142 = vrot.slane %v128, %v141
    %v143 = vcombine.high %v135, %v135
    %v144 = vcombine.high %v142, %v142
    %v145 = vcombine.high %v33, %v33
    %v147 = vunpack.c.l.s4 1983009808
    %v148 = vunpack.c.0.s8 %v147
    %v149 = vlaneseq
    %v150 = vshrl.u32 %v149, 7
    %v151 = vsub.s32 %v148, %v150
    %v152 = vrot.slane %v33, %v151
    %v154 = vunpack.c.l.s4 1983009808
    %v155 = vunpack.c.0.s8 %v154
    %v156 = vlaneseq
    %v157 = vshrl.u32 %v156, 7
    %v158 = vsub.s32 %v155, %v157
    %v159 = vrot.slane %v145, %v158
    %v160 = vcombine.high %v152, %v152
    %v161 = vcombine.high %v159, %v159
    %v162 = vcombine.high %v34, %v34
    %v164 = vunpack.c.l.s4 1983009808
    %v165 = vunpack.c.0.s8 %v164
    %v166 = vlaneseq
    %v167 = vshrl.u32 %v166, 7
    %v168 = vsub.s32 %v165, %v167
    %v169 = vrot.slane %v34, %v168
    %v171 = vunpack.c.l.s4 1983009808
    %v172 = vunpack.c.0.s8 %v171
    %v173 = vlaneseq
    %v174 = vshrl.u32 %v173, 7
    %v175 = vsub.s32 %v172, %v174
    %v176 = vrot.slane %v162, %v175
    %v177 = vcombine.high %v169, %v169
    %v178 = vcombine.high %v176, %v176
    %v179 = vcombine.high %v35, %v35
    %v181 = vunpack.c.l.s4 1983009808
    %v182 = vunpack.c.0.s8 %v181
    %v183 = vlaneseq
    %v184 = vshrl.u32 %v183, 7
    %v185 = vsub.s32 %v182, %v184
    %v186 = vrot.slane %v35, %v185
    %v188 = vunpack.c.l.s4 1983009808
    %v189 = vunpack.c.0.s8 %v188
    %v190 = vlaneseq
    %v191 = vshrl.u32 %v190, 7
    %v192 = vsub.s32 %v189, %v191
    %v193 = vrot.slane %v179, %v192
    %v194 = vcombine.high %v186, %v186
    %v195 = vcombine.high %v193, %v193
    %v196 = vcombine.high %v36, %v36
    %v198 = vunpack.c.l.s4 1983009808
    %v199 = vunpack.c.0.s8 %v198
    %v200 = vlaneseq
    %v201 = vshrl.u32 %v200, 7
    %v202 = vsub.s32 %v199, %v201
    %v203 = vrot.slane %v36, %v202
    %v205 = vunpack.c.l.s4 1983009808
    %v206 = vunpack.c.0.s8 %v205
    %v207 = vlaneseq
    %v208 = vshrl.u32 %v207, 7
    %v209 = vsub.s32 %v206, %v208
    %v210 = vrot.slane %v196, %v209
    %v211 = vcombine.high %v203, %v203
    %v212 = vcombine.high %v210, %v210
    %v213 = vcombine.high %v37, %v37
    %v215 = vunpack.c.l.s4 1983009808
    %v216 = vunpack.c.0.s8 %v215
    %v217 = vlaneseq
    %v218 = vshrl.u32 %v217, 7
    %v219 = vsub.s32 %v216, %v218
    %v220 = vrot.slane %v37, %v219
    %v222 = vunpack.c.l.s4 1983009808
    %v223 = vunpack.c.0.s8 %v222
    %v224 = vlaneseq
    %v225 = vshrl.u32 %v224, 7
    %v226 = vsub.s32 %v223, %v225
    %v227 = vrot.slane %v213, %v226
    %v228 = vcombine.high %v220, %v220
    %v229 = vcombine.high %v227, %v227
    %v230 = vcombine.high %v38, %v38
    %v232 = vunpack.c.l.s4 1983009808
    %v233 = vunpack.c.0.s8 %v232
    %v234 = vlaneseq
    %v235 = vshrl.u32 %v234, 7
    %v236 = vsub.s32 %v233, %v235
    %v237 = vrot.slane %v38, %v236
    %v239 = vunpack.c.l.s4 1983009808
    %v240 = vunpack.c.0.s8 %v239
    %v241 = vlaneseq
    %v242 = vshrl.u32 %v241, 7
    %v243 = vsub.s32 %v240, %v242
    %v244 = vrot.slane %v230, %v243
    %v245 = vcombine.high %v237, %v237
    %v246 = vcombine.high %v244, %v244
    %v247 = vcombine.high %v39, %v39
    %v249 = vunpack.c.l.s4 1983009808
    %v250 = vunpack.c.0.s8 %v249
    %v251 = vlaneseq
    %v252 = vshrl.u32 %v251, 7
    %v253 = vsub.s32 %v250, %v252
    %v254 = vrot.slane %v39, %v253
    %v256 = vunpack.c.l.s4 1983009808
    %v257 = vunpack.c.0.s8 %v256
    %v258 = vlaneseq
    %v259 = vshrl.u32 %v258, 7
    %v260 = vsub.s32 %v257, %v259
    %v261 = vrot.slane %v247, %v260
    %v262 = vcombine.high %v254, %v254
    %v263 = vcombine.high %v261, %v261
    %v264 = vcombine.high %v40, %v40
    %v266 = vunpack.c.l.s4 1983009808
    %v267 = vunpack.c.0.s8 %v266
    %v268 = vlaneseq
    %v269 = vshrl.u32 %v268, 7
    %v270 = vsub.s32 %v267, %v269
    %v271 = vrot.slane %v40, %v270
    %v273 = vunpack.c.l.s4 1983009808
    %v274 = vunpack.c.0.s8 %v273
    %v275 = vlaneseq
    %v276 = vshrl.u32 %v275, 7
    %v277 = vsub.s32 %v274, %v276
    %v278 = vrot.slane %v264, %v277
    %v279 = vcombine.high %v271, %v271
    %v280 = vcombine.high %v278, %v278
    %v281 = vcombine.high %v41, %v41
    %v283 = vunpack.c.l.s4 1983009808
    %v284 = vunpack.c.0.s8 %v283
    %v285 = vlaneseq
    %v286 = vshrl.u32 %v285, 7
    %v287 = vsub.s32 %v284, %v286
    %v288 = vrot.slane %v41, %v287
    %v290 = vunpack.c.l.s4 1983009808
    %v291 = vunpack.c.0.s8 %v290
    %v292 = vlaneseq
    %v293 = vshrl.u32 %v292, 7
    %v294 = vsub.s32 %v291, %v293
    %v295 = vrot.slane %v281, %v294
    %v296 = vcombine.high %v288, %v288
    %v297 = vcombine.high %v295, %v295
    %v298 = vcombine.high %v42, %v42
    %v300 = vunpack.c.l.s4 1983009808
    %v301 = vunpack.c.0.s8 %v300
    %v302 = vlaneseq
    %v303 = vshrl.u32 %v302, 7
    %v304 = vsub.s32 %v301, %v303
    %v305 = vrot.slane %v42, %v304
    %v307 = vunpack.c.l.s4 1983009808
    %v308 = vunpack.c.0.s8 %v307
    %v309 = vlaneseq
    %v310 = vshrl.u32 %v309, 7
    %v311 = vsub.s32 %v308, %v310
    %v312 = vrot.slane %v298, %v311
    %v313 = vcombine.high %v305, %v305
    %v314 = vcombine.high %v312, %v312
    %v315 = vcombine.high %v43, %v43
    %v317 = vunpack.c.l.s4 1983009808
    %v318 = vunpack.c.0.s8 %v317
    %v319 = vlaneseq
    %v320 = vshrl.u32 %v319, 7
    %v321 = vsub.s32 %v318, %v320
    %v322 = vrot.slane %v43, %v321
    %v324 = vunpack.c.l.s4 1983009808
    %v325 = vunpack.c.0.s8 %v324
    %v326 = vlaneseq
    %v327 = vshrl.u32 %v326, 7
    %v328 = vsub.s32 %v325, %v327
    %v329 = vrot.slane %v315, %v328
    %v330 = vcombine.high %v322, %v322
    %v331 = vcombine.high %v329, %v329
    %v332 = vlaneseq
    %v333 = vshrl.u32 %v332, 7
    %v334 = vsub.s32 1, %v333
    %v335 = vrot.slane %v67, %v334
    %v336 = vlaneseq
    %v337 = vshrl.u32 %v336, 7
    %v338 = vsub.s32 1, %v337
    %v339 = vrot.slane %v75, %v338
    %v340 = vlaneseq
    %v341 = vshrl.u32 %v340, 7
    %v342 = vsub.s32 1, %v341
    %v343 = vrot.slane %v74, %v342
    %v344 = vlaneseq
    %v345 = vshrl.u32 %v344, 7
    %v346 = vsub.s32 1, %v345
    %v347 = vrot.slane %v76, %v346
    %v348 = vlaneseq
    %v349 = vshrl.u32 %v348, 7
    %v350 = vsub.s32 1, %v349
    %v351 = vrot.slane %v84, %v350
    %v352 = vlaneseq
    %v353 = vshrl.u32 %v352, 7
    %v354 = vsub.s32 1, %v353
    %v355 = vrot.slane %v92, %v354
    %v356 = vlaneseq
    %v357 = vshrl.u32 %v356, 7
    %v358 = vsub.s32 1, %v357
    %v359 = vrot.slane %v91, %v358
    %v360 = vlaneseq
    %v361 = vshrl.u32 %v360, 7
    %v362 = vsub.s32 1, %v361
    %v363 = vrot.slane %v101, %v362
    %v364 = vlaneseq
    %v365 = vshrl.u32 %v364, 7
    %v366 = vsub.s32 1, %v365
    %v367 = vrot.slane %v109, %v366
    %v368 = vlaneseq
    %v369 = vshrl.u32 %v368, 7
    %v370 = vsub.s32 1, %v369
    %v371 = vrot.slane %v108, %v370
    %v372 = vlaneseq
    %v373 = vshrl.u32 %v372, 7
    %v374 = vsub.s32 1, %v373
    %v375 = vrot.slane %v110, %v374
    %v376 = vlaneseq
    %v377 = vshrl.u32 %v376, 7
    %v378 = vsub.s32 1, %v377
    %v379 = vrot.slane %v118, %v378
    %v380 = vlaneseq
    %v381 = vshrl.u32 %v380, 7
    %v382 = vsub.s32 1, %v381
    %v383 = vrot.slane %v126, %v382
    %v384 = vlaneseq
    %v385 = vshrl.u32 %v384, 7
    %v386 = vsub.s32 1, %v385
    %v387 = vrot.slane %v125, %v386
    %v388 = vlaneseq
    %v389 = vshrl.u32 %v388, 7
    %v390 = vsub.s32 1, %v389
    %v391 = vrot.slane %v135, %v390
    %v392 = vlaneseq
    %v393 = vshrl.u32 %v392, 7
    %v394 = vsub.s32 1, %v393
    %v395 = vrot.slane %v143, %v394
    %v396 = vlaneseq
    %v397 = vshrl.u32 %v396, 7
    %v398 = vsub.s32 1, %v397
    %v399 = vrot.slane %v142, %v398
    %v400 = vlaneseq
    %v401 = vshrl.u32 %v400, 7
    %v402 = vsub.s32 1, %v401
    %v403 = vrot.slane %v144, %v402
    %v404 = vlaneseq
    %v405 = vshrl.u32 %v404, 7
    %v406 = vsub.s32 1, %v405
    %v407 = vrot.slane %v152, %v406
    %v408 = vlaneseq
    %v409 = vshrl.u32 %v408, 7
    %v410 = vsub.s32 1, %v409
    %v411 = vrot.slane %v160, %v410
    %v412 = vlaneseq
    %v413 = vshrl.u32 %v412, 7
    %v414 = vsub.s32 1, %v413
    %v415 = vrot.slane %v159, %v414
    %v416 = vlaneseq
    %v417 = vshrl.u32 %v416, 7
    %v418 = vsub.s32 1, %v417
    %v419 = vrot.slane %v169, %v418
    %v420 = vlaneseq
    %v421 = vshrl.u32 %v420, 7
    %v422 = vsub.s32 1, %v421
    %v423 = vrot.slane %v177, %v422
    %v424 = vlaneseq
    %v425 = vshrl.u32 %v424, 7
    %v426 = vsub.s32 1, %v425
    %v427 = vrot.slane %v176, %v426
    %v428 = vlaneseq
    %v429 = vshrl.u32 %v428, 7
    %v430 = vsub.s32 1, %v429
    %v431 = vrot.slane %v178, %v430
    %v432 = vlaneseq
    %v433 = vshrl.u32 %v432, 7
    %v434 = vsub.s32 1, %v433
    %v435 = vrot.slane %v186, %v434
    %v436 = vlaneseq
    %v437 = vshrl.u32 %v436, 7
    %v438 = vsub.s32 1, %v437
    %v439 = vrot.slane %v194, %v438
    %v440 = vlaneseq
    %v441 = vshrl.u32 %v440, 7
    %v442 = vsub.s32 1, %v441
    %v443 = vrot.slane %v193, %v442
    %v444 = vlaneseq
    %v445 = vshrl.u32 %v444, 7
    %v446 = vsub.s32 1, %v445
    %v447 = vrot.slane %v203, %v446
    %v448 = vlaneseq
    %v449 = vshrl.u32 %v448, 7
    %v450 = vsub.s32 1, %v449
    %v451 = vrot.slane %v211, %v450
    %v452 = vlaneseq
    %v453 = vshrl.u32 %v452, 7
    %v454 = vsub.s32 1, %v453
    %v455 = vrot.slane %v210, %v454
    %v456 = vlaneseq
    %v457 = vshrl.u32 %v456, 7
    %v458 = vsub.s32 1, %v457
    %v459 = vrot.slane %v212, %v458
    %v460 = vlaneseq
    %v461 = vshrl.u32 %v460, 7
    %v462 = vsub.s32 1, %v461
    %v463 = vrot.slane %v220, %v462
    %v464 = vlaneseq
    %v465 = vshrl.u32 %v464, 7
    %v466 = vsub.s32 1, %v465
    %v467 = vrot.slane %v228, %v466
    %v468 = vlaneseq
    %v469 = vshrl.u32 %v468, 7
    %v470 = vsub.s32 1, %v469
    %v471 = vrot.slane %v227, %v470
    %v472 = vlaneseq
    %v473 = vshrl.u32 %v472, 7
    %v474 = vsub.s32 1, %v473
    %v475 = vrot.slane %v237, %v474
    %v476 = vlaneseq
    %v477 = vshrl.u32 %v476, 7
    %v478 = vsub.s32 1, %v477
    %v479 = vrot.slane %v245, %v478
    %v480 = vlaneseq
    %v481 = vshrl.u32 %v480, 7
    %v482 = vsub.s32 1, %v481
    %v483 = vrot.slane %v244, %v482
    %v484 = vlaneseq
    %v485 = vshrl.u32 %v484, 7
    %v486 = vsub.s32 1, %v485
    %v487 = vrot.slane %v246, %v486
    %v488 = vlaneseq
    %v489 = vshrl.u32 %v488, 7
    %v490 = vsub.s32 1, %v489
    %v491 = vrot.slane %v254, %v490
    %v492 = vlaneseq
    %v493 = vshrl.u32 %v492, 7
    %v494 = vsub.s32 1, %v493
    %v495 = vrot.slane %v262, %v494
    %v496 = vlaneseq
    %v497 = vshrl.u32 %v496, 7
    %v498 = vsub.s32 1, %v497
    %v499 = vrot.slane %v261, %v498
    %v500 = vlaneseq
    %v501 = vshrl.u32 %v500, 7
    %v502 = vsub.s32 1, %v501
    %v503 = vrot.slane %v271, %v502
    %v504 = vlaneseq
    %v505 = vshrl.u32 %v504, 7
    %v506 = vsub.s32 1, %v505
    %v507 = vrot.slane %v279, %v506
    %v508 = vlaneseq
    %v509 = vshrl.u32 %v508, 7
    %v510 = vsub.s32 1, %v509
    %v511 = vrot.slane %v278, %v510
    %v512 = vlaneseq
    %v513 = vshrl.u32 %v512, 7
    %v514 = vsub.s32 1, %v513
    %v515 = vrot.slane %v280, %v514
    %v516 = vlaneseq
    %v517 = vshrl.u32 %v516, 7
    %v518 = vsub.s32 1, %v517
    %v519 = vrot.slane %v288, %v518
    %v520 = vlaneseq
    %v521 = vshrl.u32 %v520, 7
    %v522 = vsub.s32 1, %v521
    %v523 = vrot.slane %v296, %v522
    %v524 = vlaneseq
    %v525 = vshrl.u32 %v524, 7
    %v526 = vsub.s32 1, %v525
    %v527 = vrot.slane %v295, %v526
    %v528 = vlaneseq
    %v529 = vshrl.u32 %v528, 7
    %v530 = vsub.s32 1, %v529
    %v531 = vrot.slane %v305, %v530
    %v532 = vlaneseq
    %v533 = vshrl.u32 %v532, 7
    %v534 = vsub.s32 1, %v533
    %v535 = vrot.slane %v313, %v534
    %v536 = vlaneseq
    %v537 = vshrl.u32 %v536, 7
    %v538 = vsub.s32 1, %v537
    %v539 = vrot.slane %v312, %v538
    %v540 = vlaneseq
    %v541 = vshrl.u32 %v540, 7
    %v542 = vsub.s32 1, %v541
    %v543 = vrot.slane %v314, %v542
    %v544 = vlaneseq
    %v545 = vshrl.u32 %v544, 7
    %v546 = vsub.s32 1, %v545
    %v547 = vrot.slane %v322, %v546
    %v548 = vlaneseq
    %v549 = vshrl.u32 %v548, 7
    %v550 = vsub.s32 1, %v549
    %v551 = vrot.slane %v330, %v550
    %v552 = vlaneseq
    %v553 = vshrl.u32 %v552, 7
    %v554 = vsub.s32 1, %v553
    %v555 = vrot.slane %v329, %v554
    %vm556 = vcmask 1042434
    %v557 = vsel %vm556, %v339, %v335
    %vm558 = vcmask 1043459
    %v559 = vsel %vm558, %v343, %v557
    %vm560 = vcmask 1044484
    %v561 = vsel %vm560, %v347, %v559
    %vm562 = vcmask 1045509
    %v563 = vsel %vm562, %v351, %v561
    %vm564 = vcmask 1046534
    %v565 = vsel %vm564, %v355, %v563
    %vm566 = vcmask 1047559
    %v567 = vsel %vm566, %v359, %v565
    %v568 = vsel %vm556, %v367, %v363
    %v569 = vsel %vm558, %v371, %v568
    %v570 = vsel %vm560, %v375, %v569
    %v571 = vsel %vm562, %v379, %v570
    %v572 = vsel %vm564, %v383, %v571
    %v573 = vsel %vm566, %v387, %v572
    %v574 = vsel %vm556, %v395, %v391
    %v575 = vsel %vm558, %v399, %v574
    %v576 = vsel %vm560, %v403, %v575
    %v577 = vsel %vm562, %v407, %v576
    %v578 = vsel %vm564, %v411, %v577
    %v579 = vsel %vm566, %v415, %v578
    %v580 = vsel %vm556, %v423, %v419
    %v581 = vsel %vm558, %v427, %v580
    %v582 = vsel %vm560, %v431, %v581
    %v583 = vsel %vm562, %v435, %v582
    %v584 = vsel %vm564, %v439, %v583
    %v585 = vsel %vm566, %v443, %v584
    %v586 = vsel %vm556, %v451, %v447
    %v587 = vsel %vm558, %v455, %v586
    %v588 = vsel %vm560, %v459, %v587
    %v589 = vsel %vm562, %v463, %v588
    %v590 = vsel %vm564, %v467, %v589
    %v591 = vsel %vm566, %v471, %v590
    %v592 = vsel %vm556, %v479, %v475
    %v593 = vsel %vm558, %v483, %v592
    %v594 = vsel %vm560, %v487, %v593
    %v595 = vsel %vm562, %v491, %v594
    %v596 = vsel %vm564, %v495, %v595
    %v597 = vsel %vm566, %v499, %v596
    %v598 = vsel %vm556, %v507, %v503
    %v599 = vsel %vm558, %v511, %v598
    %v600 = vsel %vm560, %v515, %v599
    %v601 = vsel %vm562, %v519, %v600
    %v602 = vsel %vm564, %v523, %v601
    %v603 = vsel %vm566, %v527, %v602
    %v604 = vsel %vm556, %v535, %v531
    %v605 = vsel %vm558, %v539, %v604
    %v606 = vsel %vm560, %v543, %v605
    %v607 = vsel %vm562, %v547, %v606
    %v608 = vsel %vm564, %v551, %v607
    %v609 = vsel %vm566, %v555, %v608
    %vm618 = vcmask 1040384
    %v619 = vsel %vm618, 0.0, %v567
    %v620 = vsel %vm618, 0.0, %v573
    %v621 = vsel %vm618, 0.0, %v579
    %v622 = vsel %vm618, 0.0, %v585
    %v623 = vsel %vm618, 0.0, %v591
    %v624 = vsel %vm618, 0.0, %v597
    %v625 = vsel %vm618, 0.0, %v603
    %v626 = vsel %vm618, 0.0, %v609
    %v627 = vld [vmem:[%s0] sm:$0xff]
    %v629 = vcombine.high %v627, %v627
    %v631 = vunpack.c.l.s4 1966171168
    %v632 = vunpack.c.0.s8 %v631
    %v633 = vlaneseq
    %v634 = vshrl.u32 %v633, 7
    %v635 = vsub.s32 %v632, %v634
    %v636 = vrot.slane %v627, %v635
    %v638 = vunpack.c.l.s4 1966171168
    %v639 = vunpack.c.0.s8 %v638
    %v640 = vlaneseq
    %v641 = vshrl.u32 %v640, 7
    %v642 = vsub.s32 %v639, %v641
    %v643 = vrot.slane %v629, %v642
    %v644 = vcombine.high %v636, %v636
    %v645 = vcombine.high %v643, %v643
    %v647 = vunpack.c.l.s4 1966171168
    %v648 = vunpack.c.0.s8 %v647
    %v649 = vlaneseq
    %v650 = vshrl.u32 %v649, 7
    %v651 = vsub.s32 %v648, %v650
    %v652 = vrot.slane %v636, %v651
    %v654 = vunpack.c.l.s4 1966171168
    %v655 = vunpack.c.0.s8 %v654
    %v656 = vlaneseq
    %v657 = vshrl.u32 %v656, 7
    %v658 = vsub.s32 %v655, %v657
    %v659 = vrot.slane %v643, %v658
    %v661 = vunpack.c.l.s4 1966171168
    %v662 = vunpack.c.0.s8 %v661
    %v663 = vlaneseq
    %v664 = vshrl.u32 %v663, 7
    %v665 = vsub.s32 %v662, %v664
    %v666 = vrot.slane %v644, %v665
    %v668 = vunpack.c.l.s4 1966171168
    %v669 = vunpack.c.0.s8 %v668
    %v670 = vlaneseq
    %v671 = vshrl.u32 %v670, 7
    %v672 = vsub.s32 %v669, %v671
    %v673 = vrot.slane %v645, %v672
    %v674 = vcombine.high %v652, %v652
    %v675 = vcombine.high %v659, %v659
    %v676 = vcombine.high %v666, %v666
    %v677 = vcombine.high %v673, %v673
    %v678 = vlaneseq
    %v679 = vshrl.u32 %v678, 7
    %v680 = vsub.s32 0, %v679
    %v681 = vrot.slane %v652, %v680
    %v682 = vlaneseq
    %v683 = vshrl.u32 %v682, 7
    %v684 = vsub.s32 0, %v683
    %v685 = vrot.slane %v666, %v684
    %v686 = vlaneseq
    %v687 = vshrl.u32 %v686, 7
    %v688 = vsub.s32 0, %v687
    %v689 = vrot.slane %v674, %v688
    %v690 = vlaneseq
    %v691 = vshrl.u32 %v690, 7
    %v692 = vsub.s32 0, %v691
    %v693 = vrot.slane %v676, %v692
    %v694 = vlaneseq
    %v695 = vshrl.u32 %v694, 7
    %v696 = vsub.s32 0, %v695
    %v697 = vrot.slane %v659, %v696
    %v698 = vlaneseq
    %v699 = vshrl.u32 %v698, 7
    %v700 = vsub.s32 0, %v699
    %v701 = vrot.slane %v673, %v700
    %v702 = vlaneseq
    %v703 = vshrl.u32 %v702, 7
    %v704 = vsub.s32 0, %v703
    %v705 = vrot.slane %v675, %v704
    %v706 = vlaneseq
    %v707 = vshrl.u32 %v706, 7
    %v708 = vsub.s32 0, %v707
    %v709 = vrot.slane %v677, %v708
    %v710 = vld [vmem:[%s1] sm:$0xff]
    %v712 = vcombine.high %v710, %v710
    %v714 = vunpack.c.l.s4 1966171168
    %v715 = vunpack.c.0.s8 %v714
    %v716 = vlaneseq
    %v717 = vshrl.u32 %v716, 7
    %v718 = vsub.s32 %v715, %v717
    %v719 = vrot.slane %v710, %v718
    %v721 = vunpack.c.l.s4 1966171168
    %v722 = vunpack.c.0.s8 %v721
    %v723 = vlaneseq
    %v724 = vshrl.u32 %v723, 7
    %v725 = vsub.s32 %v722, %v724
    %v726 = vrot.slane %v712, %v725
    %v727 = vcombine.high %v719, %v719
    %v728 = vcombine.high %v726, %v726
    %v730 = vunpack.c.l.s4 1966171168
    %v731 = vunpack.c.0.s8 %v730
    %v732 = vlaneseq
    %v733 = vshrl.u32 %v732, 7
    %v734 = vsub.s32 %v731, %v733
    %v735 = vrot.slane %v719, %v734
    %v737 = vunpack.c.l.s4 1966171168
    %v738 = vunpack.c.0.s8 %v737
    %v739 = vlaneseq
    %v740 = vshrl.u32 %v739, 7
    %v741 = vsub.s32 %v738, %v740
    %v742 = vrot.slane %v726, %v741
    %v744 = vunpack.c.l.s4 1966171168
    %v745 = vunpack.c.0.s8 %v744
    %v746 = vlaneseq
    %v747 = vshrl.u32 %v746, 7
    %v748 = vsub.s32 %v745, %v747
    %v749 = vrot.slane %v727, %v748
    %v751 = vunpack.c.l.s4 1966171168
    %v752 = vunpack.c.0.s8 %v751
    %v753 = vlaneseq
    %v754 = vshrl.u32 %v753, 7
    %v755 = vsub.s32 %v752, %v754
    %v756 = vrot.slane %v728, %v755
    %v757 = vcombine.high %v735, %v735
    %v758 = vcombine.high %v742, %v742
    %v759 = vcombine.high %v749, %v749
    %v760 = vcombine.high %v756, %v756
    %v761 = vlaneseq
    %v762 = vshrl.u32 %v761, 7
    %v763 = vsub.s32 0, %v762
    %v764 = vrot.slane %v735, %v763
    %v765 = vlaneseq
    %v766 = vshrl.u32 %v765, 7
    %v767 = vsub.s32 0, %v766
    %v768 = vrot.slane %v749, %v767
    %v769 = vlaneseq
    %v770 = vshrl.u32 %v769, 7
    %v771 = vsub.s32 0, %v770
    %v772 = vrot.slane %v757, %v771
    %v773 = vlaneseq
    %v774 = vshrl.u32 %v773, 7
    %v775 = vsub.s32 0, %v774
    %v776 = vrot.slane %v759, %v775
    %v777 = vlaneseq
    %v778 = vshrl.u32 %v777, 7
    %v779 = vsub.s32 0, %v778
    %v780 = vrot.slane %v742, %v779
    %v781 = vlaneseq
    %v782 = vshrl.u32 %v781, 7
    %v783 = vsub.s32 0, %v782
    %v784 = vrot.slane %v756, %v783
    %v785 = vlaneseq
    %v786 = vshrl.u32 %v785, 7
    %v787 = vsub.s32 0, %v786
    %v788 = vrot.slane %v758, %v787
    %v789 = vlaneseq
    %v790 = vshrl.u32 %v789, 7
    %v791 = vsub.s32 0, %v790
    %v792 = vrot.slane %v760, %v791
    %793 = vset.pattern.permute.xlu0 0
    %794 = vperm.xlu0 %793, %v681
    %v795 = vpop.permute.xlu0 %794
    %797 = vset.pattern.permute.xlu0 0
    %798 = vperm.xlu0 %797, %v685
    %v799 = vpop.permute.xlu0 %798
    %801 = vset.pattern.permute.xlu0 0
    %802 = vperm.xlu0 %801, %v689
    %v803 = vpop.permute.xlu0 %802
    %805 = vset.pattern.permute.xlu0 0
    %806 = vperm.xlu0 %805, %v693
    %v807 = vpop.permute.xlu0 %806
    %809 = vset.pattern.permute.xlu0 0
    %810 = vperm.xlu0 %809, %v697
    %v811 = vpop.permute.xlu0 %810
    %813 = vset.pattern.permute.xlu0 0
    %814 = vperm.xlu0 %813, %v701
    %v815 = vpop.permute.xlu0 %814
    %817 = vset.pattern.permute.xlu0 0
    %818 = vperm.xlu0 %817, %v705
    %v819 = vpop.permute.xlu0 %818
    %821 = vset.pattern.permute.xlu0 0
    %822 = vperm.xlu0 %821, %v709
    %v823 = vpop.permute.xlu0 %822
    %v825 = vmul.f32 %v795, %v619
    %v826 = vmul.f32 %v799, %v620
    %v827 = vmul.f32 %v803, %v621
    %v828 = vmul.f32 %v807, %v622
    %v829 = vmul.f32 %v811, %v623
    %v830 = vmul.f32 %v815, %v624
    %v831 = vmul.f32 %v819, %v625
    %v832 = vmul.f32 %v823, %v626
    %833 = vset.pattern.permute.xlu0 1
    %834 = vperm.xlu0 %833, %v681
    %v835 = vpop.permute.xlu0 %834
    %837 = vset.pattern.permute.xlu0 1
    %838 = vperm.xlu0 %837, %v685
    %v839 = vpop.permute.xlu0 %838
    %841 = vset.pattern.permute.xlu0 1
    %842 = vperm.xlu0 %841, %v689
    %v843 = vpop.permute.xlu0 %842
    %845 = vset.pattern.permute.xlu0 1
    %846 = vperm.xlu0 %845, %v693
    %v847 = vpop.permute.xlu0 %846
    %849 = vset.pattern.permute.xlu0 1
    %850 = vperm.xlu0 %849, %v697
    %v851 = vpop.permute.xlu0 %850
    %853 = vset.pattern.permute.xlu0 1
    %854 = vperm.xlu0 %853, %v701
    %v855 = vpop.permute.xlu0 %854
    %857 = vset.pattern.permute.xlu0 1
    %858 = vperm.xlu0 %857, %v705
    %v859 = vpop.permute.xlu0 %858
    %861 = vset.pattern.permute.xlu0 1
    %862 = vperm.xlu0 %861, %v709
    %v863 = vpop.permute.xlu0 %862
    %v865 = vlaneseq
    %v866 = vshrl.u32 %v865, 7
    %v867 = vsub.s32 0, %v866
    %v868 = vrot.slane %v67, %v867
    %v869 = vlaneseq
    %v870 = vshrl.u32 %v869, 7
    %v871 = vsub.s32 0, %v870
    %v872 = vrot.slane %v75, %v871
    %v873 = vlaneseq
    %v874 = vshrl.u32 %v873, 7
    %v875 = vsub.s32 0, %v874
    %v876 = vrot.slane %v74, %v875
    %v877 = vlaneseq
    %v878 = vshrl.u32 %v877, 7
    %v879 = vsub.s32 0, %v878
    %v880 = vrot.slane %v76, %v879
    %v881 = vlaneseq
    %v882 = vshrl.u32 %v881, 7
    %v883 = vsub.s32 0, %v882
    %v884 = vrot.slane %v84, %v883
    %v885 = vlaneseq
    %v886 = vshrl.u32 %v885, 7
    %v887 = vsub.s32 0, %v886
    %v888 = vrot.slane %v92, %v887
    %v889 = vlaneseq
    %v890 = vshrl.u32 %v889, 7
    %v891 = vsub.s32 0, %v890
    %v892 = vrot.slane %v91, %v891
    %v893 = vlaneseq
    %v894 = vshrl.u32 %v893, 7
    %v895 = vsub.s32 0, %v894
    %v896 = vrot.slane %v93, %v895
    %v897 = vlaneseq
    %v898 = vshrl.u32 %v897, 7
    %v899 = vsub.s32 0, %v898
    %v900 = vrot.slane %v101, %v899
    %v901 = vlaneseq
    %v902 = vshrl.u32 %v901, 7
    %v903 = vsub.s32 0, %v902
    %v904 = vrot.slane %v109, %v903
    %v905 = vlaneseq
    %v906 = vshrl.u32 %v905, 7
    %v907 = vsub.s32 0, %v906
    %v908 = vrot.slane %v108, %v907
    %v909 = vlaneseq
    %v910 = vshrl.u32 %v909, 7
    %v911 = vsub.s32 0, %v910
    %v912 = vrot.slane %v110, %v911
    %v913 = vlaneseq
    %v914 = vshrl.u32 %v913, 7
    %v915 = vsub.s32 0, %v914
    %v916 = vrot.slane %v118, %v915
    %v917 = vlaneseq
    %v918 = vshrl.u32 %v917, 7
    %v919 = vsub.s32 0, %v918
    %v920 = vrot.slane %v126, %v919
    %v921 = vlaneseq
    %v922 = vshrl.u32 %v921, 7
    %v923 = vsub.s32 0, %v922
    %v924 = vrot.slane %v125, %v923
    %v925 = vlaneseq
    %v926 = vshrl.u32 %v925, 7
    %v927 = vsub.s32 0, %v926
    %v928 = vrot.slane %v127, %v927
    %v929 = vlaneseq
    %v930 = vshrl.u32 %v929, 7
    %v931 = vsub.s32 0, %v930
    %v932 = vrot.slane %v135, %v931
    %v933 = vlaneseq
    %v934 = vshrl.u32 %v933, 7
    %v935 = vsub.s32 0, %v934
    %v936 = vrot.slane %v143, %v935
    %v937 = vlaneseq
    %v938 = vshrl.u32 %v937, 7
    %v939 = vsub.s32 0, %v938
    %v940 = vrot.slane %v142, %v939
    %v941 = vlaneseq
    %v942 = vshrl.u32 %v941, 7
    %v943 = vsub.s32 0, %v942
    %v944 = vrot.slane %v144, %v943
    %v945 = vlaneseq
    %v946 = vshrl.u32 %v945, 7
    %v947 = vsub.s32 0, %v946
    %v948 = vrot.slane %v152, %v947
    %v949 = vlaneseq
    %v950 = vshrl.u32 %v949, 7
    %v951 = vsub.s32 0, %v950
    %v952 = vrot.slane %v160, %v951
    %v953 = vlaneseq
    %v954 = vshrl.u32 %v953, 7
    %v955 = vsub.s32 0, %v954
    %v956 = vrot.slane %v159, %v955
    %v957 = vlaneseq
    %v958 = vshrl.u32 %v957, 7
    %v959 = vsub.s32 0, %v958
    %v960 = vrot.slane %v161, %v959
    %v961 = vlaneseq
    %v962 = vshrl.u32 %v961, 7
    %v963 = vsub.s32 0, %v962
    %v964 = vrot.slane %v169, %v963
    %v965 = vlaneseq
    %v966 = vshrl.u32 %v965, 7
    %v967 = vsub.s32 0, %v966
    %v968 = vrot.slane %v177, %v967
    %v969 = vlaneseq
    %v970 = vshrl.u32 %v969, 7
    %v971 = vsub.s32 0, %v970
    %v972 = vrot.slane %v176, %v971
    %v973 = vlaneseq
    %v974 = vshrl.u32 %v973, 7
    %v975 = vsub.s32 0, %v974
    %v976 = vrot.slane %v178, %v975
    %v977 = vlaneseq
    %v978 = vshrl.u32 %v977, 7
    %v979 = vsub.s32 0, %v978
    %v980 = vrot.slane %v186, %v979
    %v981 = vlaneseq
    %v982 = vshrl.u32 %v981, 7
    %v983 = vsub.s32 0, %v982
    %v984 = vrot.slane %v194, %v983
    %v985 = vlaneseq
    %v986 = vshrl.u32 %v985, 7
    %v987 = vsub.s32 0, %v986
    %v988 = vrot.slane %v193, %v987
    %v989 = vlaneseq
    %v990 = vshrl.u32 %v989, 7
    %v991 = vsub.s32 0, %v990
    %v992 = vrot.slane %v195, %v991
    %v993 = vlaneseq
    %v994 = vshrl.u32 %v993, 7
    %v995 = vsub.s32 0, %v994
    %v996 = vrot.slane %v203, %v995
    %v997 = vlaneseq
    %v998 = vshrl.u32 %v997, 7
    %v999 = vsub.s32 0, %v998
    %v1000 = vrot.slane %v211, %v999
    %v1001 = vlaneseq
    %v1002 = vshrl.u32 %v1001, 7
    %v1003 = vsub.s32 0, %v1002
    %v1004 = vrot.slane %v210, %v1003
    %v1005 = vlaneseq
    %v1006 = vshrl.u32 %v1005, 7
    %v1007 = vsub.s32 0, %v1006
    %v1008 = vrot.slane %v212, %v1007
    %v1009 = vlaneseq
    %v1010 = vshrl.u32 %v1009, 7
    %v1011 = vsub.s32 0, %v1010
    %v1012 = vrot.slane %v220, %v1011
    %v1013 = vlaneseq
    %v1014 = vshrl.u32 %v1013, 7
    %v1015 = vsub.s32 0, %v1014
    %v1016 = vrot.slane %v228, %v1015
    %v1017 = vlaneseq
    %v1018 = vshrl.u32 %v1017, 7
    %v1019 = vsub.s32 0, %v1018
    %v1020 = vrot.slane %v227, %v1019
    %v1021 = vlaneseq
    %v1022 = vshrl.u32 %v1021, 7
    %v1023 = vsub.s32 0, %v1022
    %v1024 = vrot.slane %v229, %v1023
    %v1025 = vlaneseq
    %v1026 = vshrl.u32 %v1025, 7
    %v1027 = vsub.s32 0, %v1026
    %v1028 = vrot.slane %v237, %v1027
    %v1029 = vlaneseq
    %v1030 = vshrl.u32 %v1029, 7
    %v1031 = vsub.s32 0, %v1030
    %v1032 = vrot.slane %v245, %v1031
    %v1033 = vlaneseq
    %v1034 = vshrl.u32 %v1033, 7
    %v1035 = vsub.s32 0, %v1034
    %v1036 = vrot.slane %v244, %v1035
    %v1037 = vlaneseq
    %v1038 = vshrl.u32 %v1037, 7
    %v1039 = vsub.s32 0, %v1038
    %v1040 = vrot.slane %v246, %v1039
    %v1041 = vlaneseq
    %v1042 = vshrl.u32 %v1041, 7
    %v1043 = vsub.s32 0, %v1042
    %v1044 = vrot.slane %v254, %v1043
    %v1045 = vlaneseq
    %v1046 = vshrl.u32 %v1045, 7
    %v1047 = vsub.s32 0, %v1046
    %v1048 = vrot.slane %v262, %v1047
    %v1049 = vlaneseq
    %v1050 = vshrl.u32 %v1049, 7
    %v1051 = vsub.s32 0, %v1050
    %v1052 = vrot.slane %v261, %v1051
    %v1053 = vlaneseq
    %v1054 = vshrl.u32 %v1053, 7
    %v1055 = vsub.s32 0, %v1054
    %v1056 = vrot.slane %v263, %v1055
    %v1057 = vlaneseq
    %v1058 = vshrl.u32 %v1057, 7
    %v1059 = vsub.s32 0, %v1058
    %v1060 = vrot.slane %v271, %v1059
    %v1061 = vlaneseq
    %v1062 = vshrl.u32 %v1061, 7
    %v1063 = vsub.s32 0, %v1062
    %v1064 = vrot.slane %v279, %v1063
    %v1065 = vlaneseq
    %v1066 = vshrl.u32 %v1065, 7
    %v1067 = vsub.s32 0, %v1066
    %v1068 = vrot.slane %v278, %v1067
    %v1069 = vlaneseq
    %v1070 = vshrl.u32 %v1069, 7
    %v1071 = vsub.s32 0, %v1070
    %v1072 = vrot.slane %v280, %v1071
    %v1073 = vlaneseq
    %v1074 = vshrl.u32 %v1073, 7
    %v1075 = vsub.s32 0, %v1074
    %v1076 = vrot.slane %v288, %v1075
    %v1077 = vlaneseq
    %v1078 = vshrl.u32 %v1077, 7
    %v1079 = vsub.s32 0, %v1078
    %v1080 = vrot.slane %v296, %v1079
    %v1081 = vlaneseq
    %v1082 = vshrl.u32 %v1081, 7
    %v1083 = vsub.s32 0, %v1082
    %v1084 = vrot.slane %v295, %v1083
    %v1085 = vlaneseq
    %v1086 = vshrl.u32 %v1085, 7
    %v1087 = vsub.s32 0, %v1086
    %v1088 = vrot.slane %v297, %v1087
    %v1089 = vlaneseq
    %v1090 = vshrl.u32 %v1089, 7
    %v1091 = vsub.s32 0, %v1090
    %v1092 = vrot.slane %v305, %v1091
    %v1093 = vlaneseq
    %v1094 = vshrl.u32 %v1093, 7
    %v1095 = vsub.s32 0, %v1094
    %v1096 = vrot.slane %v313, %v1095
    %v1097 = vlaneseq
    %v1098 = vshrl.u32 %v1097, 7
    %v1099 = vsub.s32 0, %v1098
    %v1100 = vrot.slane %v312, %v1099
    %v1101 = vlaneseq
    %v1102 = vshrl.u32 %v1101, 7
    %v1103 = vsub.s32 0, %v1102
    %v1104 = vrot.slane %v314, %v1103
    %v1105 = vlaneseq
    %v1106 = vshrl.u32 %v1105, 7
    %v1107 = vsub.s32 0, %v1106
    %v1108 = vrot.slane %v322, %v1107
    %v1109 = vlaneseq
    %v1110 = vshrl.u32 %v1109, 7
    %v1111 = vsub.s32 0, %v1110
    %v1112 = vrot.slane %v330, %v1111
    %v1113 = vlaneseq
    %v1114 = vshrl.u32 %v1113, 7
    %v1115 = vsub.s32 0, %v1114
    %v1116 = vrot.slane %v329, %v1115
    %v1117 = vlaneseq
    %v1118 = vshrl.u32 %v1117, 7
    %v1119 = vsub.s32 0, %v1118
    %v1120 = vrot.slane %v331, %v1119
    %vm1121 = vcmask 1041409
    %v1122 = vsel %vm1121, %v872, %v868
    %v1123 = vsel %vm556, %v876, %v1122
    %v1124 = vsel %vm558, %v880, %v1123
    %v1125 = vsel %vm560, %v884, %v1124
    %v1126 = vsel %vm562, %v888, %v1125
    %v1127 = vsel %vm564, %v892, %v1126
    %v1128 = vsel %vm566, %v896, %v1127
    %v1129 = vsel %vm1121, %v904, %v900
    %v1130 = vsel %vm556, %v908, %v1129
    %v1131 = vsel %vm558, %v912, %v1130
    %v1132 = vsel %vm560, %v916, %v1131
    %v1133 = vsel %vm562, %v920, %v1132
    %v1134 = vsel %vm564, %v924, %v1133
    %v1135 = vsel %vm566, %v928, %v1134
    %v1136 = vsel %vm1121, %v936, %v932
    %v1137 = vsel %vm556, %v940, %v1136
    %v1138 = vsel %vm558, %v944, %v1137
    %v1139 = vsel %vm560, %v948, %v1138
    %v1140 = vsel %vm562, %v952, %v1139
    %v1141 = vsel %vm564, %v956, %v1140
    %v1142 = vsel %vm566, %v960, %v1141
    %v1143 = vsel %vm1121, %v968, %v964
    %v1144 = vsel %vm556, %v972, %v1143
    %v1145 = vsel %vm558, %v976, %v1144
    %v1146 = vsel %vm560, %v980, %v1145
    %v1147 = vsel %vm562, %v984, %v1146
    %v1148 = vsel %vm564, %v988, %v1147
    %v1149 = vsel %vm566, %v992, %v1148
    %v1150 = vsel %vm1121, %v1000, %v996
    %v1151 = vsel %vm556, %v1004, %v1150
    %v1152 = vsel %vm558, %v1008, %v1151
    %v1153 = vsel %vm560, %v1012, %v1152
    %v1154 = vsel %vm562, %v1016, %v1153
    %v1155 = vsel %vm564, %v1020, %v1154
    %v1156 = vsel %vm566, %v1024, %v1155
    %v1157 = vsel %vm1121, %v1032, %v1028
    %v1158 = vsel %vm556, %v1036, %v1157
    %v1159 = vsel %vm558, %v1040, %v1158
    %v1160 = vsel %vm560, %v1044, %v1159
    %v1161 = vsel %vm562, %v1048, %v1160
    %v1162 = vsel %vm564, %v1052, %v1161
    %v1163 = vsel %vm566, %v1056, %v1162
    %v1164 = vsel %vm1121, %v1064, %v1060
    %v1165 = vsel %vm556, %v1068, %v1164
    %v1166 = vsel %vm558, %v1072, %v1165
    %v1167 = vsel %vm560, %v1076, %v1166
    %v1168 = vsel %vm562, %v1080, %v1167
    %v1169 = vsel %vm564, %v1084, %v1168
    %v1170 = vsel %vm566, %v1088, %v1169
    %v1171 = vsel %vm1121, %v1096, %v1092
    %v1172 = vsel %vm556, %v1100, %v1171
    %v1173 = vsel %vm558, %v1104, %v1172
    %v1174 = vsel %vm560, %v1108, %v1173
    %v1175 = vsel %vm562, %v1112, %v1174
    %v1176 = vsel %vm564, %v1116, %v1175
    %v1177 = vsel %vm566, %v1120, %v1176
    %v1186 = vmul.f32 %v835, %v1128
    %v1187 = vmul.f32 %v839, %v1135
    %v1188 = vmul.f32 %v843, %v1142
    %v1189 = vmul.f32 %v847, %v1149
    %v1190 = vmul.f32 %v851, %v1156
    %v1191 = vmul.f32 %v855, %v1163
    %v1192 = vmul.f32 %v859, %v1170
    %v1193 = vmul.f32 %v863, %v1177
    %v1194 = vadd.f32 %v825, %v1186
    %v1195 = vadd.f32 %v826, %v1187
    %v1196 = vadd.f32 %v827, %v1188
    %v1197 = vadd.f32 %v828, %v1189
    %v1198 = vadd.f32 %v829, %v1190
    %v1199 = vadd.f32 %v830, %v1191
    %v1200 = vadd.f32 %v831, %v1192
    %v1201 = vadd.f32 %v832, %v1193
    %1202 = vset.pattern.permute.xlu0 2
    %1203 = vperm.xlu0 %1202, %v681
    %v1204 = vpop.permute.xlu0 %1203
    %1206 = vset.pattern.permute.xlu0 2
    %1207 = vperm.xlu0 %1206, %v685
    %v1208 = vpop.permute.xlu0 %1207
    %1210 = vset.pattern.permute.xlu0 2
    %1211 = vperm.xlu0 %1210, %v689
    %v1212 = vpop.permute.xlu0 %1211
    %1214 = vset.pattern.permute.xlu0 2
    %1215 = vperm.xlu0 %1214, %v693
    %v1216 = vpop.permute.xlu0 %1215
    %1218 = vset.pattern.permute.xlu0 2
    %1219 = vperm.xlu0 %1218, %v697
    %v1220 = vpop.permute.xlu0 %1219
    %1222 = vset.pattern.permute.xlu0 2
    %1223 = vperm.xlu0 %1222, %v701
    %v1224 = vpop.permute.xlu0 %1223
    %1226 = vset.pattern.permute.xlu0 2
    %1227 = vperm.xlu0 %1226, %v705
    %v1228 = vpop.permute.xlu0 %1227
    %1230 = vset.pattern.permute.xlu0 2
    %1231 = vperm.xlu0 %1230, %v709
    %v1232 = vpop.permute.xlu0 %1231
    %v1234 = vlaneseq
    %v1235 = vshrl.u32 %v1234, 7
    %v1236 = vsub.s32 1, %v1235
    %v1237 = vrot.slane %v93, %v1236
    %v1238 = vlaneseq
    %v1239 = vshrl.u32 %v1238, 7
    %v1240 = vsub.s32 1, %v1239
    %v1241 = vrot.slane %v127, %v1240
    %v1242 = vlaneseq
    %v1243 = vshrl.u32 %v1242, 7
    %v1244 = vsub.s32 1, %v1243
    %v1245 = vrot.slane %v161, %v1244
    %v1246 = vlaneseq
    %v1247 = vshrl.u32 %v1246, 7
    %v1248 = vsub.s32 1, %v1247
    %v1249 = vrot.slane %v195, %v1248
    %v1250 = vlaneseq
    %v1251 = vshrl.u32 %v1250, 7
    %v1252 = vsub.s32 1, %v1251
    %v1253 = vrot.slane %v229, %v1252
    %v1254 = vlaneseq
    %v1255 = vshrl.u32 %v1254, 7
    %v1256 = vsub.s32 1, %v1255
    %v1257 = vrot.slane %v263, %v1256
    %v1258 = vlaneseq
    %v1259 = vshrl.u32 %v1258, 7
    %v1260 = vsub.s32 1, %v1259
    %v1261 = vrot.slane %v297, %v1260
    %v1262 = vlaneseq
    %v1263 = vshrl.u32 %v1262, 7
    %v1264 = vsub.s32 1, %v1263
    %v1265 = vrot.slane %v331, %v1264
    %v1266 = vsel %vm1121, %v339, %v335
    %v1267 = vsel %vm556, %v343, %v1266
    %v1268 = vsel %vm558, %v347, %v1267
    %v1269 = vsel %vm560, %v351, %v1268
    %v1270 = vsel %vm562, %v355, %v1269
    %v1271 = vsel %vm564, %v359, %v1270
    %v1272 = vsel %vm566, %v1237, %v1271
    %v1273 = vsel %vm1121, %v367, %v363
    %v1274 = vsel %vm556, %v371, %v1273
    %v1275 = vsel %vm558, %v375, %v1274
    %v1276 = vsel %vm560, %v379, %v1275
    %v1277 = vsel %vm562, %v383, %v1276
    %v1278 = vsel %vm564, %v387, %v1277
    %v1279 = vsel %vm566, %v1241, %v1278
    %v1280 = vsel %vm1121, %v395, %v391
    %v1281 = vsel %vm556, %v399, %v1280
    %v1282 = vsel %vm558, %v403, %v1281
    %v1283 = vsel %vm560, %v407, %v1282
    %v1284 = vsel %vm562, %v411, %v1283
    %v1285 = vsel %vm564, %v415, %v1284
    %v1286 = vsel %vm566, %v1245, %v1285
    %v1287 = vsel %vm1121, %v423, %v419
    %v1288 = vsel %vm556, %v427, %v1287
    %v1289 = vsel %vm558, %v431, %v1288
    %v1290 = vsel %vm560, %v435, %v1289
    %v1291 = vsel %vm562, %v439, %v1290
    %v1292 = vsel %vm564, %v443, %v1291
    %v1293 = vsel %vm566, %v1249, %v1292
    %v1294 = vsel %vm1121, %v451, %v447
    %v1295 = vsel %vm556, %v455, %v1294
    %v1296 = vsel %vm558, %v459, %v1295
    %v1297 = vsel %vm560, %v463, %v1296
    %v1298 = vsel %vm562, %v467, %v1297
    %v1299 = vsel %vm564, %v471, %v1298
    %v1300 = vsel %vm566, %v1253, %v1299
    %v1301 = vsel %vm1121, %v479, %v475
    %v1302 = vsel %vm556, %v483, %v1301
    %v1303 = vsel %vm558, %v487, %v1302
    %v1304 = vsel %vm560, %v491, %v1303
    %v1305 = vsel %vm562, %v495, %v1304
    %v1306 = vsel %vm564, %v499, %v1305
    %v1307 = vsel %vm566, %v1257, %v1306
    %v1308 = vsel %vm1121, %v507, %v503
    %v1309 = vsel %vm556, %v511, %v1308
    %v1310 = vsel %vm558, %v515, %v1309
    %v1311 = vsel %vm560, %v519, %v1310
    %v1312 = vsel %vm562, %v523, %v1311
    %v1313 = vsel %vm564, %v527, %v1312
    %v1314 = vsel %vm566, %v1261, %v1313
    %v1315 = vsel %vm1121, %v535, %v531
    %v1316 = vsel %vm556, %v539, %v1315
    %v1317 = vsel %vm558, %v543, %v1316
    %v1318 = vsel %vm560, %v547, %v1317
    %v1319 = vsel %vm562, %v551, %v1318
    %v1320 = vsel %vm564, %v555, %v1319
    %v1321 = vsel %vm566, %v1265, %v1320
    %v1330 = vmul.f32 %v1204, %v1272
    %v1331 = vmul.f32 %v1208, %v1279
    %v1332 = vmul.f32 %v1212, %v1286
    %v1333 = vmul.f32 %v1216, %v1293
    %v1334 = vmul.f32 %v1220, %v1300
    %v1335 = vmul.f32 %v1224, %v1307
    %v1336 = vmul.f32 %v1228, %v1314
    %v1337 = vmul.f32 %v1232, %v1321
    %v1338 = vadd.f32 %v1194, %v1330
    %v1339 = vadd.f32 %v1195, %v1331
    %v1340 = vadd.f32 %v1196, %v1332
    %v1341 = vadd.f32 %v1197, %v1333
    %v1342 = vadd.f32 %v1198, %v1334
    %v1343 = vadd.f32 %v1199, %v1335
    %v1344 = vadd.f32 %v1200, %v1336
    %v1345 = vadd.f32 %v1201, %v1337
    %1346 = vset.pattern.permute.xlu0 0
    %1347 = vperm.xlu0 %1346, %v764
    %v1348 = vpop.permute.xlu0 %1347
    %1350 = vset.pattern.permute.xlu0 0
    %1351 = vperm.xlu0 %1350, %v768
    %v1352 = vpop.permute.xlu0 %1351
    %1354 = vset.pattern.permute.xlu0 0
    %1355 = vperm.xlu0 %1354, %v772
    %v1356 = vpop.permute.xlu0 %1355
    %1358 = vset.pattern.permute.xlu0 0
    %1359 = vperm.xlu0 %1358, %v776
    %v1360 = vpop.permute.xlu0 %1359
    %1362 = vset.pattern.permute.xlu0 0
    %1363 = vperm.xlu0 %1362, %v780
    %v1364 = vpop.permute.xlu0 %1363
    %1366 = vset.pattern.permute.xlu0 0
    %1367 = vperm.xlu0 %1366, %v784
    %v1368 = vpop.permute.xlu0 %1367
    %1370 = vset.pattern.permute.xlu0 0
    %1371 = vperm.xlu0 %1370, %v788
    %v1372 = vpop.permute.xlu0 %1371
    %1374 = vset.pattern.permute.xlu0 0
    %1375 = vperm.xlu0 %1374, %v792
    %v1376 = vpop.permute.xlu0 %1375
    %v1378 = vadd.f32 %v1338, %v1348
    %v1379 = vadd.f32 %v1339, %v1352
    %v1380 = vadd.f32 %v1340, %v1356
    %v1381 = vadd.f32 %v1341, %v1360
    %v1382 = vadd.f32 %v1342, %v1364
    %v1383 = vadd.f32 %v1343, %v1368
    %v1384 = vadd.f32 %v1344, %v1372
    %v1385 = vadd.f32 %v1345, %v1376
    %vm1386 = vcmask 130048
    %1387 = vst.msk [vmem:[%s3] sm:$0xff] %vm1386, %v1378
    %1388 = vst.msk [vmem:[%s3 + $0x8] sm:$0xff] %vm1386, %v1379
    %1389 = vst.msk [vmem:[%s3 + $0x10] sm:$0xff] %vm1386, %v1380
    %1390 = vst.msk [vmem:[%s3 + $0x18] sm:$0xff] %vm1386, %v1381
    %1391 = vst.msk [vmem:[%s3 + $0x20] sm:$0xff] %vm1386, %v1382
    %1392 = vst.msk [vmem:[%s3 + $0x28] sm:$0xff] %vm1386, %v1383
    %1393 = vst.msk [vmem:[%s3 + $0x30] sm:$0xff] %vm1386, %v1384
    %1394 = vst.msk [vmem:[%s3 + $0x38] sm:$0xff] %vm1386, %v1385
    // Predicated region
    $region18: #{tpu_custom_call.1} parent=1 // pred_check
      _
    $region19: #{tpu_custom_call.1} parent=1 // pred_check_branch
      %1396 = sbr.rel (0) target = $region21
    $region20: #{tpu_custom_call.1} parent=1 // pred_region
      _
    $region21: #{tpu_custom_call.1} parent=1 // pred_fallthru
      _
    // Predicated region
    $region22: #{tpu_custom_call.1} parent=1 // pred_check
      _
    $region23: #{tpu_custom_call.1} parent=1 // pred_check_branch
      %1398 = sbr.rel (0) target = $region25
    $region24: #{tpu_custom_call.1} parent=1 // pred_region
      _
    $region25: #{tpu_custom_call.1} parent=1 // pred_fallthru
      _
    %1399 = vsyncpa [#allocation3], 1

</llo_original>
